<compile_context>
chip_gen: v7x
topology: tpu7x:2x2x1
jax: 0.10.0
libtpu: 0.0.40
codegen_flags: <defaults>
</compile_context>

<pallas_src>
import functools

import jax
import jax.numpy as jnp
from jax.experimental import pallas as pl
from jax.experimental.pallas import tpu as pltpu

_LANE = 128
_SUBLANE = 8


def _round_up(x: int, m: int) -> int:
    return (x + m - 1) // m * m


def _actor_kernel(x_ref, w1_ref, b1_ref, w2_ref, b2_ref, w3_ref, b3_ref, o_ref,
                  *, max_action, min_action, tanh_scaling, action_positive,
                  transpose_out, a_sub):
    # Cast the batch tile to bf16 for the MXU; accumulate in f32.
    x = x_ref[...].astype(jnp.bfloat16)

    # Layer 1: Linear + ReLU   (Dropout == identity in eval mode)
    h1 = jnp.dot(x, w1_ref[...], preferred_element_type=jnp.float32)
    h1 = jnp.maximum(h1 + b1_ref[...], 0.0)

    # Layer 2: Linear + ReLU
    h2 = jnp.dot(h1.astype(jnp.bfloat16), w2_ref[...],
                 preferred_element_type=jnp.float32)
    h2 = jnp.maximum(h2 + b2_ref[...], 0.0)

    # Layer 3: Linear (lane-dense a_pad-wide matmul on the MXU)
    act = jnp.dot(h2.astype(jnp.bfloat16), w3_ref[...],
                  preferred_element_type=jnp.float32)
    act = act + b3_ref[...]

    if transpose_out:
        # [tile_b, a_pad] -> [a_pad, tile_b] via XLU (idle slot), then keep
        # only the real action sublanes so the transform + store are narrow.
        act = act.T[:a_sub, :]

    # Output transform (compile-time branch, matches the PyTorch forward).
    # Elementwise math kept in f32 (v5e VPU/EUP have no bf16 datapath).
    if tanh_scaling:
        t = jnp.tanh(act)
        act = (t - 1.0) * ((max_action - min_action) / 2.0) + max_action
    else:
        r = jnp.maximum(act, 0.0)
        if not action_positive:
            r = -r
        act = jnp.clip(r, min_action, max_action)

    o_ref[...] = act.astype(o_ref.dtype)


def init_actor_params(key, state_dim, hidden_dim, action_dim):
    """PyTorch nn.Linear-style init: U(-1/sqrt(fan_in), 1/sqrt(fan_in)).
    Weights stored as [in, out] (transposed vs torch), f32, unpadded."""
    ks = jax.random.split(key, 6)

    def lin(kw, kb, fan_in, fan_out):
        bound = 1.0 / jnp.sqrt(jnp.float32(fan_in))
        w = jax.random.uniform(kw, (fan_in, fan_out), jnp.float32, -bound, bound)
        b = jax.random.uniform(kb, (1, fan_out), jnp.float32, -bound, bound)
        return w, b

    w1, b1 = lin(ks[0], ks[1], state_dim, hidden_dim)
    w2, b2 = lin(ks[2], ks[3], hidden_dim, hidden_dim)
    w3, b3 = lin(ks[4], ks[5], hidden_dim, action_dim)
    return {"w1": w1, "b1": b1, "w2": w2, "b2": b2, "w3": w3, "b3": b3}


def prepare_params(params):
    """Zero-pad hidden/action dims to multiples of 128 (lane-dense) and cast
    weights to bf16 once.  Padded weight columns/rows and bias entries are
    zero, so padded hidden units are exactly 0 after ReLU and contribute
    nothing downstream; the wrapper never exposes padded output lanes."""
    w1, b1 = params["w1"], params["b1"]
    w2, b2 = params["w2"], params["b2"]
    w3, b3 = params["w3"], params["b3"]
    state_dim, hidden_dim = w1.shape
    action_dim = w3.shape[1]
    h_pad = _round_up(hidden_dim, _LANE)
    a_pad = _round_up(action_dim, _LANE)

    def pad2(a, rows, cols):
        return jnp.pad(a, ((0, rows - a.shape[0]), (0, cols - a.shape[1])))

    return {
        "w1": pad2(w1, state_dim, h_pad).astype(jnp.bfloat16),
        "b1": pad2(b1, 1, h_pad).astype(jnp.float32),
        "w2": pad2(w2, h_pad, h_pad).astype(jnp.bfloat16),
        "b2": pad2(b2, 1, h_pad).astype(jnp.float32),
        "w3": pad2(w3, h_pad, a_pad).astype(jnp.bfloat16),
        "b3": pad2(b3, 1, a_pad).astype(jnp.float32),
        "action_dim": action_dim,
    }


def actor_forward(state, padded_params, *, max_action, min_action,
                  tanh_scaling=False, action_positive=False, tile_b=512,
                  transpose_out=None):
    """state: [B, state_dim] f32 (bf16 also accepted).  padded_params: output
    of prepare_params.  Returns [B, action_dim] f32."""
    w1, b1 = padded_params["w1"], padded_params["b1"]
    w2, b2 = padded_params["w2"], padded_params["b2"]
    w3, b3 = padded_params["w3"], padded_params["b3"]
    action_dim = padded_params["action_dim"]

    B, state_dim = state.shape
    h_pad = w2.shape[0]
    a_pad = w3.shape[1]
    a_sub = _round_up(action_dim, _SUBLANE)

    if transpose_out is None:
        # Small action dims: narrow sublane-padded writeback is ~16x cheaper.
        transpose_out = a_sub <= 32

    # Batch tile: multiple of 128 (batch sits on the lane axis of the
    # transposed output) and large enough to amortize ~0.35 us/step overhead.
    b_ceil = _round_up(max(B, 1), _LANE)
    tile_b = _round_up(max(_LANE, min(int(tile_b), b_ceil)), _LANE)
    # Keep >= 2 grid steps when the batch allows so v7x can use both TCs.
    if b_ceil >= 2 * _LANE:
        tile_b = min(tile_b, _round_up(-(-b_ceil // 2), _LANE))
    b_pad = _round_up(B, tile_b)
    if b_pad != B:
        state = jnp.pad(state, ((0, b_pad - B), (0, 0)))

    grid = (b_pad // tile_b,)

    # Resident-weight VMEM guard: single-buffer weights when they get big.
    weight_bytes = int((w1.size + w2.size + w3.size) * 2
                       + (b1.size + b2.size + b3.size) * 4)
    single_buffer_weights = 2 * weight_bytes > (8 << 20)
    w_kwargs = ({"pipeline_mode": pl.Buffered(1)}
                if single_buffer_weights else {})

    if transpose_out:
        out_shape = (a_sub, b_pad)
        out_block = (a_sub, tile_b)
        out_index_map = lambda i: (0, i)
    else:
        out_shape = (b_pad, a_pad)
        out_block = (tile_b, a_pad)
        out_index_map = lambda i: (i, 0)

    # Explicit VMEM budget only when it exceeds the smallest scoped default
    # (16 MiB on v5e).
    act_scratch = (3 * tile_b * h_pad + (2 if transpose_out else 1) * tile_b * a_pad) * 4
    vmem_need = (2 * tile_b * state_dim * state.dtype.itemsize
                 + 2 * out_block[0] * out_block[1] * 4
                 + (1 if single_buffer_weights else 2) * weight_bytes
                 + act_scratch + (2 << 20))
    vmem_limit = int(vmem_need) if vmem_need > (16 << 20) else None

    kernel = functools.partial(
        _actor_kernel,
        max_action=float(max_action),
        min_action=float(min_action),
        tanh_scaling=bool(tanh_scaling),
        action_positive=bool(action_positive),
        transpose_out=bool(transpose_out),
        a_sub=a_sub,
    )

    flops = 2 * b_pad * (state_dim * h_pad + h_pad * h_pad + h_pad * a_pad)
    transcendentals = b_pad * (a_sub if transpose_out else a_pad) if tanh_scaling else 0
    bytes_accessed = (state.size * state.dtype.itemsize
                      + weight_bytes
                      + out_shape[0] * out_shape[1] * 4)

    out = pl.pallas_call(
        kernel,
        out_shape=jax.ShapeDtypeStruct(out_shape, jnp.float32),
        grid=grid,
        in_specs=[
            # Batch-tiled activation stream (auto double-buffered pipeline).
            pl.BlockSpec((tile_b, state_dim), lambda i: (i, 0)),
            # Weights / biases: same block every step -> stay resident in VMEM
            # (single-buffered once they get large).
            pl.BlockSpec(w1.shape, lambda i: (0, 0), **w_kwargs),
            pl.BlockSpec(b1.shape, lambda i: (0, 0), **w_kwargs),
            pl.BlockSpec(w2.shape, lambda i: (0, 0), **w_kwargs),
            pl.BlockSpec(b2.shape, lambda i: (0, 0), **w_kwargs),
            pl.BlockSpec(w3.shape, lambda i: (0, 0), **w_kwargs),
            pl.BlockSpec(b3.shape, lambda i: (0, 0), **w_kwargs),
        ],
        out_specs=pl.BlockSpec(out_block, out_index_map),
        compiler_params=pltpu.CompilerParams(
            dimension_semantics=("parallel",),  # lets v7x use both TensorCores
            vmem_limit_bytes=vmem_limit,
        ),
        cost_estimate=pl.CostEstimate(
            flops=int(flops),
            transcendentals=int(transcendentals),
            bytes_accessed=int(bytes_accessed),
        ),
    )(state, w1, b1, w2, b2, w3, b3)

    if transpose_out:
        # Cheap: only touches a_sub * b_pad * 4 bytes (vs b_pad * a_pad * 4).
        return out[:action_dim, :B].T
    # Wide path (large action_dim): padding fraction is small here.
    return out[:B, :action_dim]


def _reference_forward(state, params, *, max_action, min_action,
                       tanh_scaling, action_positive):
    """Pure-JAX f32 reference matching the PyTorch module semantics."""
    h1 = jnp.maximum(state @ params["w1"] + params["b1"], 0.0)
    h2 = jnp.maximum(h1 @ params["w2"] + params["b2"], 0.0)
    a = h2 @ params["w3"] + params["b3"]
    if tanh_scaling:
        a = (jnp.tanh(a) - 1.0) * ((max_action - min_action) / 2.0) + max_action
    else:
        r = jnp.maximum(a, 0.0) if action_positive else -jnp.maximum(a, 0.0)
        a = jnp.clip(r, min_action, max_action)
    return a


if __name__ == "__main__":
    # Small, module-consistent shapes.
    batch = 2
    state_dim = 16
    hidden_dim = 32
    action_dim = 4
    max_action = 1.0
    min_action = -1.0

    key = jax.random.PRNGKey(0)
    k_params, k_state = jax.random.split(key)
    params = init_actor_params(k_params, state_dim, hidden_dim, action_dim)
    padded = prepare_params(params)
    state = jax.random.normal(k_state, (batch, state_dim), dtype=jnp.float32)

    # Exercise both output-transform branches (narrow transposed output path)
    # and the wide lane-dense output path.
    out_tanh = actor_forward(state, padded, max_action=max_action,
                             min_action=min_action, tanh_scaling=True)
    out_relu = actor_forward(state, padded, max_action=max_action,
                             min_action=min_action, tanh_scaling=False,
                             action_positive=False)
    out_wide = actor_forward(state, padded, max_action=max_action,
                             min_action=min_action, tanh_scaling=True,
                             transpose_out=False)
    jax.block_until_ready((out_tanh, out_relu, out_wide))

    assert out_tanh.shape == (batch, action_dim)
    assert out_relu.shape == (batch, action_dim)
    assert out_wide.shape == (batch, action_dim)

    # Correctness check against the f32 reference (tolerance accounts for the
    # bf16 MXU operands used inside the kernel).
    ref_tanh = _reference_forward(state, params, max_action=max_action,
                                  min_action=min_action, tanh_scaling=True,
                                  action_positive=False)
    ref_relu = _reference_forward(state, params, max_action=max_action,
                                  min_action=min_action, tanh_scaling=False,
                                  action_positive=False)
    assert jnp.allclose(out_tanh, ref_tanh, atol=5e-2, rtol=5e-2), (
        out_tanh, ref_tanh)
    assert jnp.allclose(out_relu, ref_relu, atol=5e-2, rtol=5e-2), (
        out_relu, ref_relu)
    assert jnp.allclose(out_wide, ref_tanh, atol=5e-2, rtol=5e-2), (
        out_wide, ref_tanh)

    print("KERNEL_OK")
</pallas_src>

<mosaic_0001>
module attributes {stable_mosaic.version = 11 : i64} {
  func.func @_actor_kernel(%arg0: i32, %arg1: memref<128x16xf32, #tpu.memory_space<vmem>>, %arg2: memref<16x128xbf16, #tpu.memory_space<vmem>>, %arg3: memref<1x128xf32, #tpu.memory_space<vmem>>, %arg4: memref<128x128xbf16, #tpu.memory_space<vmem>>, %arg5: memref<1x128xf32, #tpu.memory_space<vmem>>, %arg6: memref<128x128xbf16, #tpu.memory_space<vmem>>, %arg7: memref<1x128xf32, #tpu.memory_space<vmem>>, %arg8: memref<8x128xf32, #tpu.memory_space<vmem>>) attributes {dimension_semantics = [#tpu.dimension_semantics<parallel>], iteration_bounds = array<i64: 1>, scalar_prefetch = 0 : i64, scratch_operands = 0 : i64, tpu.core_type = #tpu.core_type<tc>, window_params = [{transform_indices = @transform_0, window_bounds = array<i64: 128, 16>}, {pipeline_mode = #tpu.pipeline_mode<synchronous>, transform_indices = @transform_1, window_bounds = array<i64: 16, 128>}, {pipeline_mode = #tpu.pipeline_mode<synchronous>, transform_indices = @transform_2, window_bounds = array<i64: 1, 128>}, {pipeline_mode = #tpu.pipeline_mode<synchronous>, transform_indices = @transform_3, window_bounds = array<i64: 128, 128>}, {pipeline_mode = #tpu.pipeline_mode<synchronous>, transform_indices = @transform_4, window_bounds = array<i64: 1, 128>}, {pipeline_mode = #tpu.pipeline_mode<synchronous>, transform_indices = @transform_5, window_bounds = array<i64: 128, 128>}, {pipeline_mode = #tpu.pipeline_mode<synchronous>, transform_indices = @transform_6, window_bounds = array<i64: 1, 128>}, {transform_indices = @transform_7, window_bounds = array<i64: 8, 128>}]} {
    %c0 = arith.constant 0 : index
    %c0_0 = arith.constant 0 : index
    %0 = vector.load %arg1[%c0, %c0_0] : memref<128x16xf32, #tpu.memory_space<vmem>>, vector<128x16xf32>
    %1 = arith.truncf %0 : vector<128x16xf32> to vector<128x16xbf16>
    %c0_1 = arith.constant 0 : index
    %c0_2 = arith.constant 0 : index
    %2 = vector.load %arg2[%c0_1, %c0_2] : memref<16x128xbf16, #tpu.memory_space<vmem>>, vector<16x128xbf16>
    %cst = arith.constant dense<0.000000e+00> : vector<128x128xf32>
    %3 = tpu.matmul %1, %2, %cst {dimension_numbers = #tpu.dot_dimension_numbers<[1], [0], [0], [1], [0, 0, 1, 1], [], []>} : vector<128x16xbf16>, vector<16x128xbf16>, vector<128x128xf32> -> vector<128x128xf32>
    %c0_3 = arith.constant 0 : index
    %c0_4 = arith.constant 0 : index
    %4 = vector.load %arg3[%c0_3, %c0_4] : memref<1x128xf32, #tpu.memory_space<vmem>>, vector<1x128xf32>
    %5 = vector.broadcast %4 : vector<1x128xf32> to vector<128x128xf32>
    %6 = arith.addf %3, %5 : vector<128x128xf32>
    %cst_5 = arith.constant 0.000000e+00 : f32
    %7 = vector.broadcast %cst_5 : f32 to vector<128x128xf32>
    %8 = arith.maximumf %6, %7 : vector<128x128xf32>
    %9 = arith.truncf %8 : vector<128x128xf32> to vector<128x128xbf16>
    %c0_6 = arith.constant 0 : index
    %c0_7 = arith.constant 0 : index
    %10 = vector.load %arg4[%c0_6, %c0_7] : memref<128x128xbf16, #tpu.memory_space<vmem>>, vector<128x128xbf16>
    %cst_8 = arith.constant dense<0.000000e+00> : vector<128x128xf32>
    %11 = tpu.matmul %9, %10, %cst_8 {dimension_numbers = #tpu.dot_dimension_numbers<[1], [0], [0], [1], [0, 0, 1, 1], [], []>} : vector<128x128xbf16>, vector<128x128xbf16>, vector<128x128xf32> -> vector<128x128xf32>
    %c0_9 = arith.constant 0 : index
    %c0_10 = arith.constant 0 : index
    %12 = vector.load %arg5[%c0_9, %c0_10] : memref<1x128xf32, #tpu.memory_space<vmem>>, vector<1x128xf32>
    %13 = vector.broadcast %12 : vector<1x128xf32> to vector<128x128xf32>
    %14 = arith.addf %11, %13 : vector<128x128xf32>
    %cst_11 = arith.constant 0.000000e+00 : f32
    %15 = vector.broadcast %cst_11 : f32 to vector<128x128xf32>
    %16 = arith.maximumf %14, %15 : vector<128x128xf32>
    %17 = arith.truncf %16 : vector<128x128xf32> to vector<128x128xbf16>
    %c0_12 = arith.constant 0 : index
    %c0_13 = arith.constant 0 : index
    %18 = vector.load %arg6[%c0_12, %c0_13] : memref<128x128xbf16, #tpu.memory_space<vmem>>, vector<128x128xbf16>
    %cst_14 = arith.constant dense<0.000000e+00> : vector<128x128xf32>
    %19 = tpu.matmul %17, %18, %cst_14 {dimension_numbers = #tpu.dot_dimension_numbers<[1], [0], [0], [1], [0, 0, 1, 1], [], []>} : vector<128x128xbf16>, vector<128x128xbf16>, vector<128x128xf32> -> vector<128x128xf32>
    %c0_15 = arith.constant 0 : index
    %c0_16 = arith.constant 0 : index
    %20 = vector.load %arg7[%c0_15, %c0_16] : memref<1x128xf32, #tpu.memory_space<vmem>>, vector<1x128xf32>
    %21 = vector.broadcast %20 : vector<1x128xf32> to vector<128x128xf32>
    %22 = arith.addf %19, %21 : vector<128x128xf32>
    %23 = tpu.transpose %22, [1, 0] : vector<128x128xf32> -> vector<128x128xf32>
    %24 = vector.extract_strided_slice %23 {offsets = [0, 0], sizes = [8, 128], strides = [1, 1]} : vector<128x128xf32> to vector<8x128xf32>
    %25 = math.tanh %24 : vector<8x128xf32>
    %cst_17 = arith.constant 1.000000e+00 : f32
    %26 = vector.broadcast %cst_17 : f32 to vector<8x128xf32>
    %27 = arith.subf %25, %26 : vector<8x128xf32>
    %cst_18 = arith.constant 1.000000e+00 : f32
    %28 = vector.broadcast %cst_18 : f32 to vector<8x128xf32>
    %29 = arith.mulf %27, %28 : vector<8x128xf32>
    %cst_19 = arith.constant 1.000000e+00 : f32
    %30 = vector.broadcast %cst_19 : f32 to vector<8x128xf32>
    %31 = arith.addf %29, %30 : vector<8x128xf32>
    %c0_20 = arith.constant 0 : index
    %c0_21 = arith.constant 0 : index
    %32 = vector.load %arg8[%c0_20, %c0_21] : memref<8x128xf32, #tpu.memory_space<vmem>>, vector<8x128xf32>
    tpu.vector_store %arg8[%c0_20, %c0_21], %31 {strides = array<i32>} : memref<8x128xf32, #tpu.memory_space<vmem>>, vector<8x128xf32>,
    return
  }
  func.func @transform_0(%arg0: i32) -> (i32, i32) {
    %c0_i32 = arith.constant 0 : i32
    %c0_i32_0 = arith.constant 0 : i32
    return %arg0, %c0_i32 : i32, i32
  }
  func.func @transform_1(%arg0: i32) -> (i32, i32) {
    %c0_i32 = arith.constant 0 : i32
    %c0_i32_0 = arith.constant 0 : i32
    %c0_i32_1 = arith.constant 0 : i32
    return %c0_i32, %c0_i32_0 : i32, i32
  }
  func.func @transform_2(%arg0: i32) -> (i32, i32) {
    %c0_i32 = arith.constant 0 : i32
    %c0_i32_0 = arith.constant 0 : i32
    %c0_i32_1 = arith.constant 0 : i32
    return %c0_i32, %c0_i32_0 : i32, i32
  }
  func.func @transform_3(%arg0: i32) -> (i32, i32) {
    %c0_i32 = arith.constant 0 : i32
    %c0_i32_0 = arith.constant 0 : i32
    %c0_i32_1 = arith.constant 0 : i32
    return %c0_i32, %c0_i32_0 : i32, i32
  }
  func.func @transform_4(%arg0: i32) -> (i32, i32) {
    %c0_i32 = arith.constant 0 : i32
    %c0_i32_0 = arith.constant 0 : i32
    %c0_i32_1 = arith.constant 0 : i32
    return %c0_i32, %c0_i32_0 : i32, i32
  }
  func.func @transform_5(%arg0: i32) -> (i32, i32) {
    %c0_i32 = arith.constant 0 : i32
    %c0_i32_0 = arith.constant 0 : i32
    %c0_i32_1 = arith.constant 0 : i32
    return %c0_i32, %c0_i32_0 : i32, i32
  }
  func.func @transform_6(%arg0: i32) -> (i32, i32) {
    %c0_i32 = arith.constant 0 : i32
    %c0_i32_0 = arith.constant 0 : i32
    %c0_i32_1 = arith.constant 0 : i32
    return %c0_i32, %c0_i32_0 : i32, i32
  }
  func.func @transform_7(%arg0: i32) -> (i32, i32) {
    %c0_i32 = arith.constant 0 : i32
    %c0_i32_0 = arith.constant 0 : i32
    return %c0_i32, %arg0 : i32, i32
  }
}

</mosaic_0001>

<llo_original>
// kernel: tpu_custom_call.1
$region0: #{tpu_custom_call.1}
  #allocation0 [shape = 'u32[]', space=smem, size = 0x4, offset = 0x4, fixed_abs, tag = 'smem constant byte address 0x4 - core index']
  #allocation1 [shape = 'u32[144,128]{1,0:T(1,128)}', space=vmem, size = 0x12000, scoped, tag = 'internal scratch']
  %s0 = inlined_call_operand.vmem [shape: f32[128,16], index: 0, kind: input, shape index: {}]
  %s1 = inlined_call_operand.vmem [shape: bf16[16,128], index: 1, kind: input, shape index: {}]
  %s2 = inlined_call_operand.vmem [shape: f32[1,128], index: 2, kind: input, shape index: {}]
  %s3 = inlined_call_operand.vmem [shape: bf16[128,128], index: 3, kind: input, shape index: {}]
  %s4 = inlined_call_operand.vmem [shape: f32[1,128], index: 4, kind: input, shape index: {}]
  %s5 = inlined_call_operand.vmem [shape: bf16[128,128], index: 5, kind: input, shape index: {}]
  %s6 = inlined_call_operand.vmem [shape: f32[1,128], index: 6, kind: input, shape index: {}]
  %s7 = inlined_call_operand.hbm [shape: f32[8,128], index: 7, kind: output, shape index: {}]
  %s8 = sld [smem:[#allocation0]]
  $region38: #{tpu_custom_call.1} parent=0
    _
  %s10 = ssub.s32 1, %s8
  %s11 = scalar_select 0, %s10, %s8
  $region1: #{tpu_custom_call.1} parent=0
    #allocation2 [shape = 'u8[4096]{0}', space=vmem, size = 0x1000, scoped, tag = 'output window, operand 0, single buffered']
    #allocation3 [shape = 's32[1]{0}', space=sflag, size = 0x4, scoped, tag = 'scoped memory for tpu_custom_call.1']
    %12 = vsyncpa [#allocation3], 0
    // Predicated region
    $region2: #{tpu_custom_call.1} parent=1 // pred_check
      _
    $region3: #{tpu_custom_call.1} parent=1 // pred_check_branch
      %14 = sbr.rel (0) target = $region5
    $region4: #{tpu_custom_call.1} parent=1 // pred_region
      _
    $region5: #{tpu_custom_call.1} parent=1 // pred_fallthru
      _
    // Predicated region
    $region6: #{tpu_custom_call.1} parent=1 // pred_check
      _
    $region7: #{tpu_custom_call.1} parent=1 // pred_check_branch
      %16 = sbr.rel (0) target = $region9
    $region8: #{tpu_custom_call.1} parent=1 // pred_region
      _
    $region9: #{tpu_custom_call.1} parent=1 // pred_fallthru
      _
    // Predicated region
    $region10: #{tpu_custom_call.1} parent=1 // pred_check
      _
    $region11: #{tpu_custom_call.1} parent=1 // pred_check_branch
      %18 = sbr.rel (0) target = $region13
    $region12: #{tpu_custom_call.1} parent=1 // pred_region
      _
    $region13: #{tpu_custom_call.1} parent=1 // pred_fallthru
      _
    // Predicated region
    $region14: #{tpu_custom_call.1} parent=1 // pred_check
      _
    $region15: #{tpu_custom_call.1} parent=1 // pred_check_branch
      %20 = sbr.rel (0) target = $region17
    $region16: #{tpu_custom_call.1} parent=1 // pred_region
      _
    $region17: #{tpu_custom_call.1} parent=1 // pred_fallthru
      _
    // Predicated region
    $region18: #{tpu_custom_call.1} parent=1 // pred_check
      _
    $region19: #{tpu_custom_call.1} parent=1 // pred_check_branch
      %22 = sbr.rel (0) target = $region21
    $region20: #{tpu_custom_call.1} parent=1 // pred_region
      _
    $region21: #{tpu_custom_call.1} parent=1 // pred_fallthru
      _
    // Predicated region
    $region22: #{tpu_custom_call.1} parent=1 // pred_check
      _
    $region23: #{tpu_custom_call.1} parent=1 // pred_check_branch
      %24 = sbr.rel (0) target = $region25
    $region24: #{tpu_custom_call.1} parent=1 // pred_region
      _
    $region25: #{tpu_custom_call.1} parent=1 // pred_fallthru
      _
    // Predicated region
    $region26: #{tpu_custom_call.1} parent=1 // pred_check
      _
    $region27: #{tpu_custom_call.1} parent=1 // pred_check_branch
      %26 = sbr.rel (0) target = $region29
    $region28: #{tpu_custom_call.1} parent=1 // pred_region
      _
    $region29: #{tpu_custom_call.1} parent=1 // pred_fallthru
      _
    %v28 = vld [vmem:[%s0] sm:$0xff]
    %v29 = vld [vmem:[%s0 + $0x8] sm:$0xff]
    %v30 = vld [vmem:[%s0 + $0x10] sm:$0xff]
    %v31 = vld [vmem:[%s0 + $0x18] sm:$0xff]
    %v32 = vld [vmem:[%s0 + $0x20] sm:$0xff]
    %v33 = vld [vmem:[%s0 + $0x28] sm:$0xff]
    %v34 = vld [vmem:[%s0 + $0x30] sm:$0xff]
    %v35 = vld [vmem:[%s0 + $0x38] sm:$0xff]
    %v36 = vld [vmem:[%s0 + $0x40] sm:$0xff]
    %v37 = vld [vmem:[%s0 + $0x48] sm:$0xff]
    %v38 = vld [vmem:[%s0 + $0x50] sm:$0xff]
    %v39 = vld [vmem:[%s0 + $0x58] sm:$0xff]
    %v40 = vld [vmem:[%s0 + $0x60] sm:$0xff]
    %v41 = vld [vmem:[%s0 + $0x68] sm:$0xff]
    %v42 = vld [vmem:[%s0 + $0x70] sm:$0xff]
    %v43 = vld [vmem:[%s0 + $0x78] sm:$0xff]
    %v44 = vpack.c.bf16 %v29, %v28
    %v45 = vpack.c.bf16 %v31, %v30
    %v46 = vpack.c.bf16 %v33, %v32
    %v47 = vpack.c.bf16 %v35, %v34
    %v48 = vpack.c.bf16 %v37, %v36
    %v49 = vpack.c.bf16 %v39, %v38
    %v50 = vpack.c.bf16 %v41, %v40
    %v51 = vpack.c.bf16 %v43, %v42
    %v52 = vld [vmem:[%s1] sm:$0xf]
    %v53 = vld [vmem:[%s1 + $0x4] sm:$0xf]
    %v54 = vld [vmem:[%s2] sm:$0x1]
    %v56 = vlaneseq
    %v57 = vshrl.u32 %v56, 7
    %v58 = vsub.s32 0, %v57
    %v59 = vrot.slane %v54, %v58
    %v63 = vunpack.c.l.b16 %v52
    %v64 = vunpack.c.l.b16 %v53
    %v65 = vpack.c.b16 %v64, %v63
    %vm67 = vcmask 130048
    %v69 = vsel %vm67, %v44, 0
    %v72 = vsel %vm67, %v45, 0
    %v75 = vsel %vm67, %v46, 0
    %v78 = vsel %vm67, %v47, 0
    %v81 = vsel %vm67, %v48, 0
    %v84 = vsel %vm67, %v49, 0
    %v87 = vsel %vm67, %v50, 0
    %v90 = vsel %vm67, %v51, 0
    %92 = vmatprep.subr.bf16.mxu0 0
    %93 = vmatpush1.bf16.msra.mxu0 %v65
    %94 = vmatprep.subr.bf16.mxu0 0
    %95 = vmatpush1.bf16.msra.mxu0 0
    %96 = vmatprep.subr.bf16.mxu0 0
    %97 = vmatpush1.bf16.msra.mxu0 0
    %98 = vmatprep.subr.bf16.mxu0 0
    %99 = vmatpush1.bf16.msra.mxu0 0
    %100 = vmatprep.subr.bf16.mxu0 0
    %101 = vmatpush1.bf16.msra.mxu0 0
    %102 = vmatprep.subr.bf16.mxu0 0
    %103 = vmatpush1.bf16.msra.mxu0 0
    %104 = vmatprep.subr.bf16.mxu0 0
    %105 = vmatpush1.bf16.msra.mxu0 0
    %106 = vmatprep.subr.bf16.mxu0 0
    %107 = vmatpush1.bf16.msra.mxu0 0
    %108 = vmatprep.subr.bf16.mxu0 0
    %109 = vmatpush1.bf16.msra.mxu0 0
    %110 = vmatprep.subr.bf16.mxu0 0
    %111 = vmatpush1.bf16.msra.mxu0 0
    %112 = vmatprep.subr.bf16.mxu0 0
    %113 = vmatpush1.bf16.msra.mxu0 0
    %114 = vmatprep.subr.bf16.mxu0 0
    %115 = vmatpush1.bf16.msra.mxu0 0
    %116 = vmatprep.subr.bf16.mxu0 0
    %117 = vmatpush1.bf16.msra.mxu0 0
    %118 = vmatprep.subr.bf16.mxu0 0
    %119 = vmatpush1.bf16.msra.mxu0 0
    %120 = vmatprep.subr.bf16.mxu0 0
    %121 = vmatpush1.bf16.msra.mxu0 0
    %122 = vmatprep.subr.bf16.mxu0 0
    %123 = vmatpush1.bf16.msra.mxu0 0
    %124 = vmatprep.mubr.bf16.mxu0 0
    %125 = vmatmul.mubr.bf16.gmra.mrb[0].mxu0 %v69
    %v126 = vpop.f32.mrb[0].mxu0
    %v127 = vadd.f32 %v59, %v126
    %v128 = vpop.f32.mrb[0].mxu0
    %v129 = vpop.f32.mrb[0].mxu0
    %v130 = vadd.f32 %v59, %v129
    %v131 = vpop.f32.mrb[0].mxu0
    %132 = vmatprep.mubr.bf16.mxu0 0
    %133 = vmatmul.mubr.bf16.gmra.mrb[0].mxu0 %v72
    %v134 = vpop.f32.mrb[0].mxu0
    %v135 = vadd.f32 %v59, %v134
    %v136 = vpop.f32.mrb[0].mxu0
    %v137 = vpop.f32.mrb[0].mxu0
    %v138 = vadd.f32 %v59, %v137
    %v139 = vpop.f32.mrb[0].mxu0
    %140 = vmatprep.mubr.bf16.mxu0 0
    %141 = vmatmul.mubr.bf16.gmra.mrb[0].mxu0 %v75
    %v142 = vpop.f32.mrb[0].mxu0
    %v143 = vadd.f32 %v59, %v142
    %v144 = vpop.f32.mrb[0].mxu0
    %v145 = vpop.f32.mrb[0].mxu0
    %v146 = vadd.f32 %v59, %v145
    %v147 = vpop.f32.mrb[0].mxu0
    %148 = vmatprep.mubr.bf16.mxu0 0
    %149 = vmatmul.mubr.bf16.gmra.mrb[0].mxu0 %v78
    %v150 = vpop.f32.mrb[0].mxu0
    %v151 = vadd.f32 %v59, %v150
    %v152 = vpop.f32.mrb[0].mxu0
    %v153 = vpop.f32.mrb[0].mxu0
    %v154 = vadd.f32 %v59, %v153
    %v155 = vpop.f32.mrb[0].mxu0
    %156 = vmatprep.mubr.bf16.mxu0 0
    %157 = vmatmul.mubr.bf16.gmra.mrb[0].mxu0 %v81
    %v158 = vpop.f32.mrb[0].mxu0
    %v159 = vadd.f32 %v59, %v158
    %v160 = vpop.f32.mrb[0].mxu0
    %v161 = vpop.f32.mrb[0].mxu0
    %v162 = vadd.f32 %v59, %v161
    %v163 = vpop.f32.mrb[0].mxu0
    %164 = vmatprep.mubr.bf16.mxu0 0
    %165 = vmatmul.mubr.bf16.gmra.mrb[0].mxu0 %v84
    %v166 = vpop.f32.mrb[0].mxu0
    %v167 = vadd.f32 %v59, %v166
    %v168 = vpop.f32.mrb[0].mxu0
    %v169 = vpop.f32.mrb[0].mxu0
    %v170 = vadd.f32 %v59, %v169
    %v171 = vpop.f32.mrb[0].mxu0
    %172 = vmatprep.mubr.bf16.mxu0 0
    %173 = vmatmul.mubr.bf16.gmra.mrb[0].mxu0 %v87
    %v174 = vpop.f32.mrb[0].mxu0
    %v175 = vadd.f32 %v59, %v174
    %v176 = vpop.f32.mrb[0].mxu0
    %v177 = vpop.f32.mrb[0].mxu0
    %v178 = vadd.f32 %v59, %v177
    %v179 = vpop.f32.mrb[0].mxu0
    %180 = vmatprep.mubr.bf16.mxu0 0
    %181 = vmatmul.mubr.bf16.gmra.mrb[0].mxu0 %v90
    %v182 = vpop.f32.mrb[0].mxu0
    %v183 = vadd.f32 %v59, %v182
    %v184 = vpop.f32.mrb[0].mxu0
    %v185 = vpop.f32.mrb[0].mxu0
    %v186 = vadd.f32 %v59, %v185
    %v187 = vpop.f32.mrb[0].mxu0
    %188 = vdwg.mxu0
    %v189 = vmax.f32 %v127, 0.0
    %v190 = vmax.f32 %v130, 0.0
    %v191 = vmax.f32 %v135, 0.0
    %v192 = vmax.f32 %v138, 0.0
    %v193 = vmax.f32 %v143, 0.0
    %v194 = vmax.f32 %v146, 0.0
    %v195 = vmax.f32 %v151, 0.0
    %v196 = vmax.f32 %v154, 0.0
    %v197 = vmax.f32 %v159, 0.0
    %v198 = vmax.f32 %v162, 0.0
    %v199 = vmax.f32 %v167, 0.0
    %v200 = vmax.f32 %v170, 0.0
    %v201 = vmax.f32 %v175, 0.0
    %v202 = vmax.f32 %v178, 0.0
    %v203 = vmax.f32 %v183, 0.0
    %v204 = vmax.f32 %v186, 0.0
    %v205 = vpack.c.bf16 %v190, %v189
    %v206 = vpack.c.bf16 %v192, %v191
    %v207 = vpack.c.bf16 %v194, %v193
    %v208 = vpack.c.bf16 %v196, %v195
    %v209 = vpack.c.bf16 %v198, %v197
    %v210 = vpack.c.bf16 %v200, %v199
    %v211 = vpack.c.bf16 %v202, %v201
    %v212 = vpack.c.bf16 %v204, %v203
    %v213 = vld [vmem:[%s3] sm:$0xf]
    %v214 = vld [vmem:[%s3 + $0x4] sm:$0xf]
    %v215 = vld [vmem:[%s3 + $0x8] sm:$0xf]
    %v216 = vld [vmem:[%s3 + $0xc] sm:$0xf]
    %v217 = vld [vmem:[%s3 + $0x10] sm:$0xf]
    %v218 = vld [vmem:[%s3 + $0x14] sm:$0xf]
    %v219 = vld [vmem:[%s3 + $0x18] sm:$0xf]
    %v220 = vld [vmem:[%s3 + $0x1c] sm:$0xf]
    %v221 = vld [vmem:[%s3 + $0x20] sm:$0xf]
    %v222 = vld [vmem:[%s3 + $0x24] sm:$0xf]
    %v223 = vld [vmem:[%s3 + $0x28] sm:$0xf]
    %v224 = vld [vmem:[%s3 + $0x2c] sm:$0xf]
    %v225 = vld [vmem:[%s3 + $0x30] sm:$0xf]
    %v226 = vld [vmem:[%s3 + $0x34] sm:$0xf]
    %v227 = vld [vmem:[%s3 + $0x38] sm:$0xf]
    %v228 = vld [vmem:[%s3 + $0x3c] sm:$0xf]
    %v229 = vld [vmem:[%s4] sm:$0x1]
    %v231 = vlaneseq
    %v232 = vshrl.u32 %v231, 7
    %v233 = vsub.s32 0, %v232
    %v234 = vrot.slane %v229, %v233
    %v252 = vunpack.c.l.b16 %v213
    %v253 = vunpack.c.l.b16 %v214
    %v254 = vunpack.c.l.b16 %v215
    %v255 = vunpack.c.l.b16 %v216
    %v256 = vunpack.c.l.b16 %v217
    %v257 = vunpack.c.l.b16 %v218
    %v258 = vunpack.c.l.b16 %v219
    %v259 = vunpack.c.l.b16 %v220
    %v260 = vunpack.c.l.b16 %v221
    %v261 = vunpack.c.l.b16 %v222
    %v262 = vunpack.c.l.b16 %v223
    %v263 = vunpack.c.l.b16 %v224
    %v264 = vunpack.c.l.b16 %v225
    %v265 = vunpack.c.l.b16 %v226
    %v266 = vunpack.c.l.b16 %v227
    %v267 = vunpack.c.l.b16 %v228
    %v268 = vpack.c.b16 %v253, %v252
    %v269 = vpack.c.b16 %v255, %v254
    %v270 = vpack.c.b16 %v257, %v256
    %v271 = vpack.c.b16 %v259, %v258
    %v272 = vpack.c.b16 %v261, %v260
    %v273 = vpack.c.b16 %v263, %v262
    %v274 = vpack.c.b16 %v265, %v264
    %v275 = vpack.c.b16 %v267, %v266
    %284 = vmatprep.subr.bf16.mxu0 0
    %285 = vmatpush1.bf16.msra.mxu0 %v268
    %286 = vmatprep.subr.bf16.mxu0 0
    %287 = vmatpush1.bf16.msra.mxu0 %v269
    %288 = vmatprep.subr.bf16.mxu0 0
    %289 = vmatpush1.bf16.msra.mxu0 %v270
    %290 = vmatprep.subr.bf16.mxu0 0
    %291 = vmatpush1.bf16.msra.mxu0 %v271
    %292 = vmatprep.subr.bf16.mxu0 0
    %293 = vmatpush1.bf16.msra.mxu0 %v272
    %294 = vmatprep.subr.bf16.mxu0 0
    %295 = vmatpush1.bf16.msra.mxu0 %v273
    %296 = vmatprep.subr.bf16.mxu0 0
    %297 = vmatpush1.bf16.msra.mxu0 %v274
    %298 = vmatprep.subr.bf16.mxu0 0
    %299 = vmatpush1.bf16.msra.mxu0 %v275
    %300 = vmatprep.subr.bf16.mxu0 0
    %301 = vmatpush1.bf16.msra.mxu0 0
    %302 = vmatprep.subr.bf16.mxu0 0
    %303 = vmatpush1.bf16.msra.mxu0 0
    %304 = vmatprep.subr.bf16.mxu0 0
    %305 = vmatpush1.bf16.msra.mxu0 0
    %306 = vmatprep.subr.bf16.mxu0 0
    %307 = vmatpush1.bf16.msra.mxu0 0
    %308 = vmatprep.subr.bf16.mxu0 0
    %309 = vmatpush1.bf16.msra.mxu0 0
    %310 = vmatprep.subr.bf16.mxu0 0
    %311 = vmatpush1.bf16.msra.mxu0 0
    %312 = vmatprep.subr.bf16.mxu0 0
    %313 = vmatpush1.bf16.msra.mxu0 0
    %314 = vmatprep.subr.bf16.mxu0 0
    %315 = vmatpush1.bf16.msra.mxu0 0
    %316 = vmatprep.mubr.bf16.mxu0 0
    %317 = vmatmul.mubr.bf16.gmra.mrb[0].mxu0 %v205
    %v318 = vpop.f32.mrb[0].mxu0
    %v319 = vadd.f32 %v234, %v318
    %v320 = vpop.f32.mrb[0].mxu0
    %v321 = vpop.f32.mrb[0].mxu0
    %v322 = vadd.f32 %v234, %v321
    %v323 = vpop.f32.mrb[0].mxu0
    %324 = vmatprep.mubr.bf16.mxu0 0
    %325 = vmatmul.mubr.bf16.gmra.mrb[0].mxu0 %v206
    %v326 = vpop.f32.mrb[0].mxu0
    %v327 = vadd.f32 %v234, %v326
    %v328 = vpop.f32.mrb[0].mxu0
    %v329 = vpop.f32.mrb[0].mxu0
    %v330 = vadd.f32 %v234, %v329
    %v331 = vpop.f32.mrb[0].mxu0
    %332 = vmatprep.mubr.bf16.mxu0 0
    %333 = vmatmul.mubr.bf16.gmra.mrb[0].mxu0 %v207
    %v334 = vpop.f32.mrb[0].mxu0
    %v335 = vadd.f32 %v234, %v334
    %v336 = vpop.f32.mrb[0].mxu0
    %v337 = vpop.f32.mrb[0].mxu0
    %v338 = vadd.f32 %v234, %v337
    %v339 = vpop.f32.mrb[0].mxu0
    %340 = vmatprep.mubr.bf16.mxu0 0
    %341 = vmatmul.mubr.bf16.gmra.mrb[0].mxu0 %v208
    %v342 = vpop.f32.mrb[0].mxu0
    %v343 = vadd.f32 %v234, %v342
    %v344 = vpop.f32.mrb[0].mxu0
    %v345 = vpop.f32.mrb[0].mxu0
    %v346 = vadd.f32 %v234, %v345
    %v347 = vpop.f32.mrb[0].mxu0
    %348 = vmatprep.mubr.bf16.mxu0 0
    %349 = vmatmul.mubr.bf16.gmra.mrb[0].mxu0 %v209
    %v350 = vpop.f32.mrb[0].mxu0
    %v351 = vadd.f32 %v234, %v350
    %v352 = vpop.f32.mrb[0].mxu0
    %v353 = vpop.f32.mrb[0].mxu0
    %v354 = vadd.f32 %v234, %v353
    %v355 = vpop.f32.mrb[0].mxu0
    %356 = vmatprep.mubr.bf16.mxu0 0
    %357 = vmatmul.mubr.bf16.gmra.mrb[0].mxu0 %v210
    %v358 = vpop.f32.mrb[0].mxu0
    %v359 = vadd.f32 %v234, %v358
    %v360 = vpop.f32.mrb[0].mxu0
    %v361 = vpop.f32.mrb[0].mxu0
    %v362 = vadd.f32 %v234, %v361
    %v363 = vpop.f32.mrb[0].mxu0
    %364 = vmatprep.mubr.bf16.mxu0 0
    %365 = vmatmul.mubr.bf16.gmra.mrb[0].mxu0 %v211
    %v366 = vpop.f32.mrb[0].mxu0
    %v367 = vadd.f32 %v234, %v366
    %v368 = vpop.f32.mrb[0].mxu0
    %v369 = vpop.f32.mrb[0].mxu0
    %v370 = vadd.f32 %v234, %v369
    %v371 = vpop.f32.mrb[0].mxu0
    %372 = vmatprep.mubr.bf16.mxu0 0
    %373 = vmatmul.mubr.bf16.gmra.mrb[0].mxu0 %v212
    %v374 = vpop.f32.mrb[0].mxu0
    %v375 = vadd.f32 %v234, %v374
    %v376 = vpop.f32.mrb[0].mxu0
    %v377 = vpop.f32.mrb[0].mxu0
    %v378 = vadd.f32 %v234, %v377
    %v379 = vpop.f32.mrb[0].mxu0
    %380 = vdwg.mxu0
    %v381 = vmax.f32 %v319, 0.0
    %v382 = vmax.f32 %v322, 0.0
    %v383 = vmax.f32 %v327, 0.0
    %v384 = vmax.f32 %v330, 0.0
    %v385 = vmax.f32 %v335, 0.0
    %v386 = vmax.f32 %v338, 0.0
    %v387 = vmax.f32 %v343, 0.0
    %v388 = vmax.f32 %v346, 0.0
    %v389 = vmax.f32 %v351, 0.0
    %v390 = vmax.f32 %v354, 0.0
    %v391 = vmax.f32 %v359, 0.0
    %v392 = vmax.f32 %v362, 0.0
    %v393 = vmax.f32 %v367, 0.0
    %v394 = vmax.f32 %v370, 0.0
    %v395 = vmax.f32 %v375, 0.0
    %v396 = vmax.f32 %v378, 0.0
    %v397 = vpack.c.bf16 %v382, %v381
    %v398 = vpack.c.bf16 %v384, %v383
    %v399 = vpack.c.bf16 %v386, %v385
    %v400 = vpack.c.bf16 %v388, %v387
    %v401 = vpack.c.bf16 %v390, %v389
    %v402 = vpack.c.bf16 %v392, %v391
    %v403 = vpack.c.bf16 %v394, %v393
    %v404 = vpack.c.bf16 %v396, %v395
    %v405 = vld [vmem:[%s5] sm:$0xf]
    %v406 = vld [vmem:[%s5 + $0x4] sm:$0xf]
    %v407 = vld [vmem:[%s5 + $0x8] sm:$0xf]
    %v408 = vld [vmem:[%s5 + $0xc] sm:$0xf]
    %v409 = vld [vmem:[%s5 + $0x10] sm:$0xf]
    %v410 = vld [vmem:[%s5 + $0x14] sm:$0xf]
    %v411 = vld [vmem:[%s5 + $0x18] sm:$0xf]
    %v412 = vld [vmem:[%s5 + $0x1c] sm:$0xf]
    %v413 = vld [vmem:[%s5 + $0x20] sm:$0xf]
    %v414 = vld [vmem:[%s5 + $0x24] sm:$0xf]
    %v415 = vld [vmem:[%s5 + $0x28] sm:$0xf]
    %v416 = vld [vmem:[%s5 + $0x2c] sm:$0xf]
    %v417 = vld [vmem:[%s5 + $0x30] sm:$0xf]
    %v418 = vld [vmem:[%s5 + $0x34] sm:$0xf]
    %v419 = vld [vmem:[%s5 + $0x38] sm:$0xf]
    %v420 = vld [vmem:[%s5 + $0x3c] sm:$0xf]
    %v421 = vld [vmem:[%s6] sm:$0x1]
    %v423 = vlaneseq
    %v424 = vshrl.u32 %v423, 7
    %v425 = vsub.s32 0, %v424
    %v426 = vrot.slane %v421, %v425
    %v444 = vunpack.c.l.b16 %v405
    %v445 = vunpack.c.l.b16 %v406
    %v446 = vunpack.c.l.b16 %v407
    %v447 = vunpack.c.l.b16 %v408
    %v448 = vunpack.c.l.b16 %v409
    %v449 = vunpack.c.l.b16 %v410
    %v450 = vunpack.c.l.b16 %v411
    %v451 = vunpack.c.l.b16 %v412
    %v452 = vunpack.c.l.b16 %v413
    %v453 = vunpack.c.l.b16 %v414
    %v454 = vunpack.c.l.b16 %v415
    %v455 = vunpack.c.l.b16 %v416
    %v456 = vunpack.c.l.b16 %v417
    %v457 = vunpack.c.l.b16 %v418
    %v458 = vunpack.c.l.b16 %v419
    %v459 = vunpack.c.l.b16 %v420
    %v460 = vpack.c.b16 %v445, %v444
    %v461 = vpack.c.b16 %v447, %v446
    %v462 = vpack.c.b16 %v449, %v448
    %v463 = vpack.c.b16 %v451, %v450
    %v464 = vpack.c.b16 %v453, %v452
    %v465 = vpack.c.b16 %v455, %v454
    %v466 = vpack.c.b16 %v457, %v456
    %v467 = vpack.c.b16 %v459, %v458
    %476 = vmatprep.subr.bf16.mxu0 0
    %477 = vmatpush1.bf16.msra.mxu0 %v460
    %478 = vmatprep.subr.bf16.mxu0 0
    %479 = vmatpush1.bf16.msra.mxu0 %v461
    %480 = vmatprep.subr.bf16.mxu0 0
    %481 = vmatpush1.bf16.msra.mxu0 %v462
    %482 = vmatprep.subr.bf16.mxu0 0
    %483 = vmatpush1.bf16.msra.mxu0 %v463
    %484 = vmatprep.subr.bf16.mxu0 0
    %485 = vmatpush1.bf16.msra.mxu0 %v464
    %486 = vmatprep.subr.bf16.mxu0 0
    %487 = vmatpush1.bf16.msra.mxu0 %v465
    %488 = vmatprep.subr.bf16.mxu0 0
    %489 = vmatpush1.bf16.msra.mxu0 %v466
    %490 = vmatprep.subr.bf16.mxu0 0
    %491 = vmatpush1.bf16.msra.mxu0 %v467
    %492 = vmatprep.subr.bf16.mxu0 0
    %493 = vmatpush1.bf16.msra.mxu0 0
    %494 = vmatprep.subr.bf16.mxu0 0
    %495 = vmatpush1.bf16.msra.mxu0 0
    %496 = vmatprep.subr.bf16.mxu0 0
    %497 = vmatpush1.bf16.msra.mxu0 0
    %498 = vmatprep.subr.bf16.mxu0 0
    %499 = vmatpush1.bf16.msra.mxu0 0
    %500 = vmatprep.subr.bf16.mxu0 0
    %501 = vmatpush1.bf16.msra.mxu0 0
    %502 = vmatprep.subr.bf16.mxu0 0
    %503 = vmatpush1.bf16.msra.mxu0 0
    %504 = vmatprep.subr.bf16.mxu0 0
    %505 = vmatpush1.bf16.msra.mxu0 0
    %506 = vmatprep.subr.bf16.mxu0 0
    %507 = vmatpush1.bf16.msra.mxu0 0
    %508 = vmatprep.mubr.bf16.mxu0 0
    %509 = vmatmul.mubr.bf16.gmra.mrb[0].mxu0 %v397
    %v510 = vpop.f32.mrb[0].mxu0
    %v511 = vadd.f32 %v426, %v510
    %v512 = vpop.f32.mrb[0].mxu0
    %v513 = vpop.f32.mrb[0].mxu0
    %v514 = vadd.f32 %v426, %v513
    %v515 = vpop.f32.mrb[0].mxu0
    %516 = vmatprep.mubr.bf16.mxu0 0
    %517 = vmatmul.mubr.bf16.gmra.mrb[0].mxu0 %v398
    %v518 = vpop.f32.mrb[0].mxu0
    %v519 = vadd.f32 %v426, %v518
    %v520 = vpop.f32.mrb[0].mxu0
    %v521 = vpop.f32.mrb[0].mxu0
    %v522 = vadd.f32 %v426, %v521
    %v523 = vpop.f32.mrb[0].mxu0
    %524 = vmatprep.mubr.bf16.mxu0 0
    %525 = vmatmul.mubr.bf16.gmra.mrb[0].mxu0 %v399
    %v526 = vpop.f32.mrb[0].mxu0
    %v527 = vadd.f32 %v426, %v526
    %v528 = vpop.f32.mrb[0].mxu0
    %v529 = vpop.f32.mrb[0].mxu0
    %v530 = vadd.f32 %v426, %v529
    %v531 = vpop.f32.mrb[0].mxu0
    %532 = vmatprep.mubr.bf16.mxu0 0
    %533 = vmatmul.mubr.bf16.gmra.mrb[0].mxu0 %v400
    %v534 = vpop.f32.mrb[0].mxu0
    %v535 = vadd.f32 %v426, %v534
    %v536 = vpop.f32.mrb[0].mxu0
    %v537 = vpop.f32.mrb[0].mxu0
    %v538 = vadd.f32 %v426, %v537
    %v539 = vpop.f32.mrb[0].mxu0
    %540 = vmatprep.mubr.bf16.mxu0 0
    %541 = vmatmul.mubr.bf16.gmra.mrb[0].mxu0 %v401
    %v542 = vpop.f32.mrb[0].mxu0
    %v543 = vadd.f32 %v426, %v542
    %v544 = vpop.f32.mrb[0].mxu0
    %v545 = vpop.f32.mrb[0].mxu0
    %v546 = vadd.f32 %v426, %v545
    %v547 = vpop.f32.mrb[0].mxu0
    %548 = vmatprep.mubr.bf16.mxu0 0
    %549 = vmatmul.mubr.bf16.gmra.mrb[0].mxu0 %v402
    %v550 = vpop.f32.mrb[0].mxu0
    %v551 = vadd.f32 %v426, %v550
    %v552 = vpop.f32.mrb[0].mxu0
    %v553 = vpop.f32.mrb[0].mxu0
    %v554 = vadd.f32 %v426, %v553
    %v555 = vpop.f32.mrb[0].mxu0
    %556 = vmatprep.mubr.bf16.mxu0 0
    %557 = vmatmul.mubr.bf16.gmra.mrb[0].mxu0 %v403
    %v558 = vpop.f32.mrb[0].mxu0
    %v559 = vadd.f32 %v426, %v558
    %v560 = vpop.f32.mrb[0].mxu0
    %v561 = vpop.f32.mrb[0].mxu0
    %v562 = vadd.f32 %v426, %v561
    %v563 = vpop.f32.mrb[0].mxu0
    %564 = vmatprep.mubr.bf16.mxu0 0
    %565 = vmatmul.mubr.bf16.gmra.mrb[0].mxu0 %v404
    %v566 = vpop.f32.mrb[0].mxu0
    %v567 = vadd.f32 %v426, %v566
    %v568 = vpop.f32.mrb[0].mxu0
    %v569 = vpop.f32.mrb[0].mxu0
    %v570 = vadd.f32 %v426, %v569
    %v571 = vpop.f32.mrb[0].mxu0
    %572 = vdwg.mxu0
    %573 = vxpose.xlu0.b32.start [1/16] %v511, 128
    %574 = vxpose.xlu0.b32.cont [2/16] %v514, 128
    %575 = vxpose.xlu0.b32.cont [3/16] %v519, 128
    %576 = vxpose.xlu0.b32.cont [4/16] %v522, 128
    %577 = vxpose.xlu0.b32.cont [5/16] %v527, 128
    %578 = vxpose.xlu0.b32.cont [6/16] %v530, 128
    %579 = vxpose.xlu0.b32.cont [7/16] %v535, 128
    %580 = vxpose.xlu0.b32.cont [8/16] %v538, 128
    %581 = vxpose.xlu0.b32.cont [9/16] %v543, 128
    %582 = vxpose.xlu0.b32.cont [10/16] %v546, 128
    %583 = vxpose.xlu0.b32.cont [11/16] %v551, 128
    %584 = vxpose.xlu0.b32.cont [12/16] %v554, 128
    %585 = vxpose.xlu0.b32.cont [13/16] %v559, 128
    %586 = vxpose.xlu0.b32.cont [14/16] %v562, 128
    %587 = vxpose.xlu0.b32.cont [15/16] %v567, 128
    %588 = vxpose.xlu0.b32.end [16/16] %v570, 128
    %v589 = vpop.trf.xlu0
    %v590 = vpop.trf.xlu0
    %v591 = vpop.trf.xlu0
    %v592 = vpop.trf.xlu0
    %v593 = vpop.trf.xlu0
    %v594 = vpop.trf.xlu0
    %v595 = vpop.trf.xlu0
    %v596 = vpop.trf.xlu0
    %v597 = vpop.trf.xlu0
    %v598 = vpop.trf.xlu0
    %v599 = vpop.trf.xlu0
    %v600 = vpop.trf.xlu0
    %v601 = vpop.trf.xlu0
    %v602 = vpop.trf.xlu0
    %v603 = vpop.trf.xlu0
    %v604 = vpop.trf.xlu0
    %v605 = vtanh.pop %v589
    %v606 = vsub.f32 %v605, 1.0
    %v607 = vadd.f32 %v606, 1.0
    %608 = vst [vmem:[#allocation2] sm:$0xff] %v607
    // Predicated region
    $region30: #{tpu_custom_call.1} parent=1 // pred_check
      _
    $region31: #{tpu_custom_call.1} parent=1 // pred_check_branch
      %610 = sbr.rel (0) target = $region33
    $region32: #{tpu_custom_call.1} parent=1 // pred_region
      %s612 = ssub.s32 128, 128
      %613 = vsyncadd [#allocation3], %s612
      %s615 = sshll.u32 [#allocation2], 4
      %s616 = int_to_ptr.vmem [resolvable:$true] %s615
      %618 = dma.vmem_to_hbm [thread:$0]  %s616, 128, %s7, [#allocation3]
    $region33: #{tpu_custom_call.1} parent=1 // pred_fallthru
      _
    // Predicated region
    $region34: #{tpu_custom_call.1} parent=1 // pred_check
      _
    $region35: #{tpu_custom_call.1} parent=1 // pred_check_branch
      %620 = sbr.rel (0) target = $region37
    $region36: #{tpu_custom_call.1} parent=1 // pred_region
      %621 = dma.done [#allocation3], 128
    $region37: #{tpu_custom_call.1} parent=1 // pred_fallthru
      _
    %622 = vsyncpa [#allocation3], 1

</llo_original>
